<compile_context>
chip_gen: v6e
topology: v6e:2x2x1
jax: 0.10.0
libtpu: 0.0.40
codegen_flags: <defaults>
</compile_context>

<pallas_src>
import math
from functools import partial

import jax
import jax.numpy as jnp
from jax.experimental import pallas as pl
from jax.experimental.pallas import tpu as pltpu


def make_positional_encoding(d_model: int, max_seq_length: int, dtype=jnp.float32):
    """Deterministic buffer init, matching the PyTorch __init__ exactly (built once)."""
    position = jnp.arange(max_seq_length, dtype=jnp.float32)[:, None]            # (S_max, 1)
    div_term = jnp.exp(
        jnp.arange(0, d_model, 2, dtype=jnp.float32) * -(math.log(10000.0) / d_model)
    )                                                                             # (d_model//2,)
    angles = position * div_term                                                  # (S_max, d_model//2)
    pe = jnp.zeros((max_seq_length, d_model), dtype=jnp.float32)
    pe = pe.at[:, 0::2].set(jnp.sin(angles))
    pe = pe.at[:, 1::2].set(jnp.cos(angles))
    return pe[None].astype(dtype)                                                 # (1, S_max, d_model)


def _add_pe_kernel(x_ref, pe_ref, o_ref):
    # x/out tiles: (Bt, ts, Dp); PE tile: (1, ts, Dp) broadcast across the folded batch dim.
    # Pure VPU elementwise add; the kernel is HBM-streaming bound.
    o_ref[...] = x_ref[...] + pe_ref[...]


def _round_up(n: int, m: int) -> int:
    return ((n + m - 1) // m) * m


_BLOCK_BYTES = 2 << 20           # ~2 MiB per x/out block -> 2 bufs x 3 arrays ~ 12 MiB scoped VMEM
_VMEM_LIMIT = 32 * 1024 * 1024   # explicit scoped-VMEM limit (safe on v5e/v6e/v7x physical VMEM)


def positional_encoding_forward(x, pe, *, min_pallas_bytes: int = 1 << 20):
    """x: (B, S, D); pe: (1, S_max, D) with S <= S_max.  Returns x + pe[:, :S]."""
    B, S, D = x.shape
    _, S_max, _ = pe.shape
    assert S <= S_max, "sequence longer than the PE table"

    if pe.dtype != x.dtype:
        # Only hit if the table wasn't built in the model dtype at init.
        pe = pe.astype(x.dtype)

    itemsize = jnp.dtype(x.dtype).itemsize

    # ---- tiny-workload fast path: kernel dispatch + per-step overhead dominates below
    # ~1 MiB; a fused XLA add is as fast with zero kernel overhead.
    if B * S * D * itemsize < min_pallas_bytes:
        return x + pe[:, :S]

    # ---- lane packing: fold seq rows into lanes when D < 128 so the last output dim is a
    # full 128-lane multiple (unmasked vst).  Odd S is padded up to the pack multiple below
    # instead of losing the optimization.
    pack = 1
    if D < 128 and 128 % D == 0:
        pack = 128 // D
    Dp = D * pack
    Sp0 = pl.cdiv(S, pack)          # packed rows needed to cover S

    # ---- seq tiling: ~2 MiB blocks, exact division (no partial tile), n_s >= 2 (even when
    # possible) so v7x's two TensorCores both get seq tiles.
    sub = {4: 8, 2: 16, 1: 32}.get(itemsize, 8)
    rows_budget = max(sub, (_BLOCK_BYTES // (Dp * itemsize)) // sub * sub)
    n_s = max(2, pl.cdiv(Sp0, rows_budget))
    if n_s % 2:
        n_s += 1
    ts = _round_up(pl.cdiv(Sp0, n_s), sub)
    n_s = pl.cdiv(Sp0, ts)          # may shrink after rounding ts up (tiny seq -> 1 tile)
    Sp = n_s * ts                   # padded packed rows: ts divides Sp exactly
    S_pad = Sp * pack               # padded rows in original (unpacked) units

    # ---- batch folding: largest Bt dividing B whose x block stays <= ~2 MiB.  Cuts grid
    # steps and reuses the PE tile via in-VMEM broadcast; remaining batch is the INNERMOST
    # grid axis so the PE block index is constant across it and its DMA is elided.
    Bt = max(1, min(B, _BLOCK_BYTES // (ts * Dp * itemsize)))
    while B % Bt:
        Bt -= 1
    n_b = B // Bt

    # ---- inputs in packed layout (contiguous reshapes; pad seq only when needed)
    xp = x if S_pad == S else jnp.pad(x, ((0, 0), (0, S_pad - S), (0, 0)))
    xp = xp.reshape(B, Sp, Dp)

    if S_max % pack == 0 and Sp <= S_max // pack:
        # Common case: the full table reshapes cleanly -> no per-call PE materialization.
        pep = pe.reshape(1, S_max // pack, Dp)
    else:
        # Rare odd-shape fallback: trim/pad the table once.  Padded rows are sliced off
        # from the output, so their PE values are irrelevant.
        rows = min(S_pad, S_max)
        pe_rows = pe[:, :rows]
        if S_pad > rows:
            pe_rows = jnp.pad(pe_rows, ((0, 0), (0, S_pad - rows), (0, 0)))
        pep = pe_rows.reshape(1, Sp, Dp)

    out = pl.pallas_call(
        _add_pe_kernel,
        out_shape=jax.ShapeDtypeStruct((B, Sp, Dp), x.dtype),
        grid_spec=pltpu.PrefetchScalarGridSpec(
            num_scalar_prefetch=0,
            grid=(n_s, n_b),        # batch innermost: PE block index constant -> DMA elided
            in_specs=[
                pl.BlockSpec((Bt, ts, Dp), lambda s, b: (b, s, 0)),   # x tile
                pl.BlockSpec((1, ts, Dp), lambda s, b: (0, s, 0)),    # PE tile (batch-invariant)
            ],
            out_specs=pl.BlockSpec((Bt, ts, Dp), lambda s, b: (b, s, 0)),
        ),
        compiler_params=pltpu.CompilerParams(
            dimension_semantics=("parallel", "parallel"),   # v7x shards across its 2 TCs
            vmem_limit_bytes=_VMEM_LIMIT,
        ),
        # TODO(synk): pass input_output_aliases={0: 0} when the caller donates x (drops the
        # extra B*S*D output allocation); omitted here since __main__ reuses x afterwards.
    )(xp, pep)

    out = out.reshape(B, S_pad, D)
    return out if S_pad == S else out[:, :S]


if __name__ == "__main__":
    d_model = 32
    max_seq_length = 128
    batch, seq = 2, 64

    pe = make_positional_encoding(d_model, max_seq_length, dtype=jnp.float32)
    key = jax.random.PRNGKey(0)
    x = jax.random.normal(key, (batch, seq, d_model), dtype=jnp.float32)

    # Reference (pure JAX, mirrors the PyTorch forward)
    ref = x + pe[:, :seq]

    # Pallas kernel path (forced: these small shapes would otherwise take the XLA fast path).
    fwd_kernel = jax.jit(partial(positional_encoding_forward, min_pallas_bytes=0))
    out_kernel = jax.block_until_ready(fwd_kernel(x, pe))
    assert out_kernel.shape == x.shape and out_kernel.dtype == x.dtype
    assert jnp.allclose(out_kernel, ref, atol=1e-6), "pallas path mismatch vs reference"

    # Default wrapper (tiny-workload fast path) must also match.
    fwd = jax.jit(positional_encoding_forward)
    out_fast = jax.block_until_ready(fwd(x, pe))
    assert jnp.allclose(out_fast, ref, atol=1e-6), "fast path mismatch vs reference"

    print("KERNEL_OK")
</pallas_src>

<mosaic_0001>
module attributes {stable_mosaic.version = 11 : i64} {
  func.func @_add_pe_kernel(%arg0: i32, %arg1: i32, %arg2: memref<2x8x128xf32, #tpu.memory_space<vmem>>, %arg3: memref<1x8x128xf32, #tpu.memory_space<vmem>>, %arg4: memref<2x8x128xf32, #tpu.memory_space<vmem>>) attributes {dimension_semantics = [#tpu.dimension_semantics<parallel>, #tpu.dimension_semantics<parallel>], iteration_bounds = array<i64: 2, 1>, scalar_prefetch = 0 : i64, scratch_operands = 0 : i64, tpu.core_type = #tpu.core_type<tc>, window_params = [{transform_indices = @transform_0, window_bounds = array<i64: 2, 8, 128>}, {transform_indices = @transform_1, window_bounds = array<i64: 1, 8, 128>}, {transform_indices = @transform_2, window_bounds = array<i64: 2, 8, 128>}]} {
    %c0 = arith.constant 0 : index
    %c0_0 = arith.constant 0 : index
    %c0_1 = arith.constant 0 : index
    %0 = vector.load %arg2[%c0, %c0_0, %c0_1] : memref<2x8x128xf32, #tpu.memory_space<vmem>>, vector<2x8x128xf32>
    %c0_2 = arith.constant 0 : index
    %c0_3 = arith.constant 0 : index
    %c0_4 = arith.constant 0 : index
    %1 = vector.load %arg3[%c0_2, %c0_3, %c0_4] : memref<1x8x128xf32, #tpu.memory_space<vmem>>, vector<1x8x128xf32>
    %2 = vector.broadcast %1 : vector<1x8x128xf32> to vector<2x8x128xf32>
    %3 = arith.addf %0, %2 : vector<2x8x128xf32>
    %c0_5 = arith.constant 0 : index
    %c0_6 = arith.constant 0 : index
    %c0_7 = arith.constant 0 : index
    %4 = vector.load %arg4[%c0_5, %c0_6, %c0_7] : memref<2x8x128xf32, #tpu.memory_space<vmem>>, vector<2x8x128xf32>
    tpu.vector_store %arg4[%c0_5, %c0_6, %c0_7], %3 {strides = array<i32>} : memref<2x8x128xf32, #tpu.memory_space<vmem>>, vector<2x8x128xf32>,
    return
  }
  func.func @transform_0(%arg0: i32, %arg1: i32) -> (i32, i32, i32) {
    %c0_i32 = arith.constant 0 : i32
    %c0_i32_0 = arith.constant 0 : i32
    return %arg1, %arg0, %c0_i32 : i32, i32, i32
  }
  func.func @transform_1(%arg0: i32, %arg1: i32) -> (i32, i32, i32) {
    %c0_i32 = arith.constant 0 : i32
    %c0_i32_0 = arith.constant 0 : i32
    %c0_i32_1 = arith.constant 0 : i32
    return %c0_i32, %arg0, %c0_i32_0 : i32, i32, i32
  }
  func.func @transform_2(%arg0: i32, %arg1: i32) -> (i32, i32, i32) {
    %c0_i32 = arith.constant 0 : i32
    %c0_i32_0 = arith.constant 0 : i32
    return %arg1, %arg0, %c0_i32 : i32, i32, i32
  }
}

</mosaic_0001>

<llo_original>
// kernel: positional_encoding_forward.1
$region0: #{positional_encoding_forward.1}
  #allocation0 [shape = 'u32[]', space=smem, size = 0x4, offset = 0x4, fixed_abs, tag = 'smem constant byte address 0x4 - core index']
  #allocation1 [shape = 'u32[144,128]{1,0:T(1,128)}', space=vmem, size = 0x12000, scoped, tag = 'internal scratch']
  %s0 = inlined_call_operand.vmem [shape: f32[2,16,128], index: 0, kind: input, shape index: {}]
  %s1 = inlined_call_operand.vmem [shape: f32[1,32,128], index: 1, kind: input, shape index: {}]
  %s2 = inlined_call_operand.vmem [shape: f32[2,16,128], index: 2, kind: output, shape index: {}]
  %s3 = sld [smem:[#allocation0]]
  $region113: #{positional_encoding_forward.1} parent=0
    _
  %s5 = ssub.s32 1, %s3
  %s6 = scalar_select 0, %s5, %s3
  $region1: #{positional_encoding_forward.1} parent=0
    #allocation2 [shape = 'u8[16384]{0}', space=vmem, size = 0x4000, scoped, tag = 'input window, operand 0']
    #allocation3 [shape = 'u8[16384]{0}', space=vmem, size = 0x4000, scoped, tag = 'output window, operand 0']
    loop: start=0, step=1, limit=4
    $region2: #{positional_encoding_forward.1} parent=1 // loop_pre_header
      _
    $region3: #{positional_encoding_forward.1} parent=1 // loop_header
      %s8 = sphi 0, %s12
      %p9 = scmp.ge.s32.totalorder %s8, 4
      %s15 = sphi 0, %s27
      %s16 = sphi 0, %s23
      %s17 = sphi 0, %s15
      %s18 = sphi 0, %s16
      %s19 = sphi 0, %s17
      %s20 = sphi 0, %s18
      %s32 = sphi 0, %s34
      %s35 = sphi 0, %s32
      %s36 = sphi 0, %s35
      %s52 = sphi 0, %s36
      %s58 = sphi 0, %s60
      %s61 = sphi 0, %s58
      %s62 = sphi 0, %s61
      %s78 = sphi 0, %s62
      %s86 = sphi 0, %s88
      %s89 = sphi 0, %s86
      %s90 = sphi 0, %s89
      %s106 = sphi 0, %s90
    $region4: #{positional_encoding_forward.1} parent=1 // loop_header_branch
      %11 = sbr.rel (%p9) target = $region8
    $region5: #{positional_encoding_forward.1} parent=1 // loop_body
      %s13 = ssub.s32 %s8, 1
      %s14 = ssub.s32 %s8, 2
      %s21 = sadd.s32 1, %s16
      %p22 = scmp.ge.s32.totalorder %s21, 1
      %s23 = scalar_select %p22, 0, %s21
      %s24 = sadd.s32 1, %s15
      %s25 = scalar_select %p22, %s24, %s15
      %p26 = scmp.ge.s32.totalorder %s25, 2
      %s27 = scalar_select %p26, 0, %s25
      %s28 = ssub.s32 %s16, %s23
      %s29 = ssub.s32 %s15, %s27
      %s30 = sor.u32 %s28, %s29
      %p31 = scmp.eq.s32.totalorder %s30, 0
      %s33 = sadd.s32 %s32, 1
      %s34 = scalar_select %p31, %s32, %s33
      %p37 = pneg %p31
      %p38 = scmp.eq.s32.totalorder %s8, 1
      %p39 = por %p37, %p38
      %p40 = scmp.ne.s32.totalorder %s32, %s35
      %p41 = scmp.eq.s32.totalorder %s8, 0
      %p42 = por %p40, %p41
      %p43 = scmp.ne.s32.totalorder %s32, %s35
      %p44 = scmp.eq.s32.totalorder %s13, 1
      %p45 = por %p43, %p44
      %p46 = scmp.ne.s32.totalorder %s35, %s36
      %p47 = scmp.eq.s32.totalorder %s13, 0
      %p48 = por %p46, %p47
      %p49 = scmp.ne.s32.totalorder %s35, %s36
      %p50 = scmp.eq.s32.totalorder %s14, 1
      %p51 = por %p49, %p50
      %p53 = scmp.ne.s32.totalorder %s36, %s52
      %p54 = scmp.eq.s32.totalorder %s14, 0
      %p55 = por %p53, %p54
      %s56 = ssub.s32 %s15, %s27
      %p57 = scmp.eq.s32.totalorder %s56, 0
      %s59 = sadd.s32 %s58, 1
      %s60 = scalar_select %p57, %s58, %s59
      %p63 = pneg %p57
      %p64 = scmp.eq.s32.totalorder %s8, 1
      %p65 = por %p63, %p64
      %p66 = scmp.ne.s32.totalorder %s58, %s61
      %p67 = scmp.eq.s32.totalorder %s8, 0
      %p68 = por %p66, %p67
      %p69 = scmp.ne.s32.totalorder %s58, %s61
      %p70 = scmp.eq.s32.totalorder %s13, 1
      %p71 = por %p69, %p70
      %p72 = scmp.ne.s32.totalorder %s61, %s62
      %p73 = scmp.eq.s32.totalorder %s13, 0
      %p74 = por %p72, %p73
      %p75 = scmp.ne.s32.totalorder %s61, %s62
      %p76 = scmp.eq.s32.totalorder %s14, 1
      %p77 = por %p75, %p76
      %p79 = scmp.ne.s32.totalorder %s62, %s78
      %p80 = scmp.eq.s32.totalorder %s14, 0
      %p81 = por %p79, %p80
      %s82 = ssub.s32 %s16, %s23
      %s83 = ssub.s32 %s15, %s27
      %s84 = sor.u32 %s82, %s83
      %p85 = scmp.eq.s32.totalorder %s84, 0
      %s87 = sadd.s32 %s86, 1
      %s88 = scalar_select %p85, %s86, %s87
      %p91 = pneg %p85
      %p92 = scmp.eq.s32.totalorder %s8, 1
      %p93 = por %p91, %p92
      %p94 = scmp.ne.s32.totalorder %s86, %s89
      %p95 = scmp.eq.s32.totalorder %s8, 0
      %p96 = por %p94, %p95
      %p97 = scmp.ne.s32.totalorder %s86, %s89
      %p98 = scmp.eq.s32.totalorder %s13, 1
      %p99 = por %p97, %p98
      %p100 = scmp.ne.s32.totalorder %s89, %s90
      %p101 = scmp.eq.s32.totalorder %s13, 0
      %p102 = por %p100, %p101
      %p103 = scmp.ne.s32.totalorder %s89, %s90
      %p104 = scmp.eq.s32.totalorder %s14, 1
      %p105 = por %p103, %p104
      %p107 = scmp.ne.s32.totalorder %s90, %s106
      %p108 = scmp.eq.s32.totalorder %s14, 0
      %p109 = por %p107, %p108
      %p110 = scmp.le.s32.totalorder 1, %s8
      %p111 = scmp.lt.s32.totalorder %s8, 3
      %p112 = pnand %p110, %p111
      %p113 = pneg %p112
      // Predicated region
      $region9: #{positional_encoding_forward.1} parent=5 // pred_check
        _
      $region10: #{positional_encoding_forward.1} parent=5 // pred_check_branch
        %115 = sbr.rel (%p112) target = $region12
      $region11: #{positional_encoding_forward.1} parent=5 // pred_region
        %s116 = ssub.s32 %s8, 1
      $region12: #{positional_encoding_forward.1} parent=5 // pred_fallthru
        _
      %p117 = scmp.lt.s32.totalorder %s8, 2
      // Predicated region
      $region13: #{positional_encoding_forward.1} parent=5 // pred_check
        %p118 = pneg %p117
      $region14: #{positional_encoding_forward.1} parent=5 // pred_check_branch
        %120 = sbr.rel (%p118) target = $region16
      $region15: #{positional_encoding_forward.1} parent=5 // pred_region
        // Predicated region
        $region17: #{positional_encoding_forward.1} parent=15 // pred_check
          %p121 = pneg %p42
        $region18: #{positional_encoding_forward.1} parent=15 // pred_check_branch
          %123 = sbr.rel (%p121) target = $region20
        $region19: #{positional_encoding_forward.1} parent=15 // pred_region
          %s124 = sand.u32 %s32, 1
          %s125 = sand.u32 %s32, 1
          %s126 = smul.addr %s125, 16
          %s127 = scalar_lea.vmem [#allocation2], %s126
          %s128 = smul.u32 2, %s16
          %s129 = smul.addr %s128, 2
          %s130 = sadd.s32 %s15, %s129
          %s131 = smul.addr %s130, 8
          %s132 = scalar_lea.vmem %s0, %s131
          // Predicated region
          $region21: #{positional_encoding_forward.1} parent=19 // pred_check
            _
          $region22: #{positional_encoding_forward.1} parent=19 // pred_check_branch
            %134 = sbr.rel (0) target = $region24
          $region23: #{positional_encoding_forward.1} parent=19 // pred_region
            // Predicated region
            $region25: #{positional_encoding_forward.1} parent=23 // pred_check
              _
            $region26: #{positional_encoding_forward.1} parent=23 // pred_check_branch
              %136 = sbr.rel (0) target = $region28
            $region27: #{positional_encoding_forward.1} parent=23 // pred_region
              // Predicated region
              $region40: #{positional_encoding_forward.1} parent=27 // pred_check
                _
              $region41: #{positional_encoding_forward.1} parent=27 // pred_check_branch
                %154 = sbr.rel (0) target = $region43
              $region42: #{positional_encoding_forward.1} parent=27 // pred_region
                loop: start=0, step=1, limit=1
                $region44: #{positional_encoding_forward.1} parent=42 // loop_pre_header
                  _
                $region45: #{positional_encoding_forward.1} parent=42 // loop_header
                  %s156 = sphi 0, %s160
                  %p157 = scmp.ge.s32.totalorder %s156, 1
                  %s161 = sphi %s132, %s132
                  %s162 = sphi %s127, %s127
                $region46: #{positional_encoding_forward.1} parent=42 // loop_header_branch
                  %159 = sbr.rel (%p157) target = $region50
                $region47: #{positional_encoding_forward.1} parent=42 // loop_body
                  %v163 = vld [vmem:[%s161] sm:$0xff]
                  %164 = vst [vmem:[%s162] sm:$0xff] %v163
                  %v165 = vld [vmem:[%s161 + $0x10] sm:$0xff]
                  %166 = vst [vmem:[%s162 + $0x8] sm:$0xff] %v165
                $region48: #{positional_encoding_forward.1} parent=42 // loop_footer
                  %s160 = sadd.s32 1, %s156
                $region49: #{positional_encoding_forward.1} parent=42 // loop_footer_branch
                  %155 = sbr.rel target = $region45
                $region50: #{positional_encoding_forward.1} parent=42 // loop_exit
                  _
              $region43: #{positional_encoding_forward.1} parent=27 // pred_fallthru
                _
              // Predicated region
              $region51: #{positional_encoding_forward.1} parent=27 // pred_check
                _
              $region52: #{positional_encoding_forward.1} parent=27 // pred_check_branch
                %168 = sbr.rel target = $region54
              $region53: #{positional_encoding_forward.1} parent=27 // pred_region
                _
              $region54: #{positional_encoding_forward.1} parent=27 // pred_fallthru
                _
            $region28: #{positional_encoding_forward.1} parent=23 // pred_fallthru
              _
            // Predicated region
            $region29: #{positional_encoding_forward.1} parent=23 // pred_check
              _
            $region30: #{positional_encoding_forward.1} parent=23 // pred_check_branch
              %138 = sbr.rel target = $region32
            $region31: #{positional_encoding_forward.1} parent=23 // pred_region
              %s140 = ssub.s32 256, 1
              loop: start=0, step=1, limit=1
              $region33: #{positional_encoding_forward.1} parent=31 // loop_pre_header
                _
              $region34: #{positional_encoding_forward.1} parent=31 // loop_header
                %s142 = sphi 0, %s146
                %p143 = scmp.ge.s32.totalorder %s142, 1
                %s147 = sphi %s132, %s132
                %s148 = sphi %s127, %s127
              $region35: #{positional_encoding_forward.1} parent=31 // loop_header_branch
                %145 = sbr.rel (%p143) target = $region39
              $region36: #{positional_encoding_forward.1} parent=31 // loop_body
                %v149 = vld [vmem:[%s147] sm:%s140]
                %150 = vst [vmem:[%s148] sm:%s140] %v149
                %v151 = vld [vmem:[%s147 + $0x10] sm:%s140]
                %152 = vst [vmem:[%s148 + $0x8] sm:%s140] %v151
              $region37: #{positional_encoding_forward.1} parent=31 // loop_footer
                %s146 = sadd.s32 1, %s142
              $region38: #{positional_encoding_forward.1} parent=31 // loop_footer_branch
                %141 = sbr.rel target = $region34
              $region39: #{positional_encoding_forward.1} parent=31 // loop_exit
                _
            $region32: #{positional_encoding_forward.1} parent=23 // pred_fallthru
              _
          $region24: #{positional_encoding_forward.1} parent=19 // pred_fallthru
            _
          %169 = vnop
        $region20: #{positional_encoding_forward.1} parent=15 // pred_fallthru
          _
        // Predicated region
        $region55: #{positional_encoding_forward.1} parent=15 // pred_check
          %p170 = pneg %p68
        $region56: #{positional_encoding_forward.1} parent=15 // pred_check_branch
          %172 = sbr.rel (%p170) target = $region58
        $region57: #{positional_encoding_forward.1} parent=15 // pred_region
          %p173 = scmp.lt.s32.totalorder %s15, 3
          %s174 = scalar_select %p173, %s15, 3
          %s175 = smul.addr %s174, 8
          %s176 = scalar_lea.vmem %s1, %s175
        $region58: #{positional_encoding_forward.1} parent=15 // pred_fallthru
          _
      $region16: #{positional_encoding_forward.1} parent=5 // pred_fallthru
        _
      %p177 = scmp.le.s32.totalorder 1, %s8
      %p178 = scmp.lt.s32.totalorder %s8, 3
      %p179 = pnand %p177, %p178
      %p180 = pneg %p179
      // Predicated region
      $region59: #{positional_encoding_forward.1} parent=5 // pred_check
        _
      $region60: #{positional_encoding_forward.1} parent=5 // pred_check_branch
        %182 = sbr.rel (%p179) target = $region62
      $region61: #{positional_encoding_forward.1} parent=5 // pred_region
        %s183 = ssub.s32 %s8, 1
        %s184 = sand.u32 %s35, 1
        %s185 = sand.u32 %s35, 1
        %s186 = smul.addr %s185, 16
        %s187 = scalar_lea.vmem [#allocation2], %s186
        // Predicated region
        $region63: #{positional_encoding_forward.1} parent=61 // pred_check
          %p188 = pneg %p48
        $region64: #{positional_encoding_forward.1} parent=61 // pred_check_branch
          %190 = sbr.rel (%p188) target = $region66
        $region65: #{positional_encoding_forward.1} parent=61 // pred_region
          _
        $region66: #{positional_encoding_forward.1} parent=61 // pred_fallthru
          _
        %s191 = sand.u32 %s35, 1
        %s192 = sand.u32 %s35, 1
        %s193 = smul.addr %s192, 16
        %s194 = scalar_lea.vmem [#allocation2], %s193
        %p195 = pneg %p48
        %p196 = pneg %p45
        %p197 = scmp.lt.s32.totalorder %s17, 3
        %s198 = scalar_select %p197, %s17, 3
        %s199 = smul.addr %s198, 8
        %s200 = scalar_lea.vmem %s1, %s199
        %p201 = pneg %p74
        %p202 = pneg %p71
        %p203 = pneg %p102
        %p204 = pneg %p99
        %s205 = sand.u32 %s89, 1
        %s206 = sand.u32 %s89, 1
        %s207 = smul.addr %s206, 16
        %s208 = scalar_lea.vmem [#allocation3], %s207
        %s209 = smul.u32 2, %s18
        %p210 = scmp.lt.s32.totalorder %s17, 3
        %s211 = scalar_select %p210, %s17, 3
        %s212 = smul.addr %s211, 8
        %s213 = scalar_lea.vmem %s1, %s212
        %s214 = smul.u32 2, %s18
        %v215 = vld [vmem:[%s187] sm:$0xff]
        %v216 = vld [vmem:[%s187 + $0x8] sm:$0xff]
        %v217 = vld [vmem:[%s213] sm:$0xff]
        %v218 = vadd.f32 %v215, %v217
        %v219 = vadd.f32 %v216, %v217
        %220 = vst [vmem:[%s208] sm:$0xff] %v218
        %221 = vst [vmem:[%s208 + $0x8] sm:$0xff] %v219
        %s222 = sand.u32 %s89, 1
        %s223 = sand.u32 %s89, 1
        %s224 = smul.addr %s223, 16
        %s225 = scalar_lea.vmem [#allocation3], %s224
        // Predicated region
        $region67: #{positional_encoding_forward.1} parent=61 // pred_check
          %p226 = pneg %p99
        $region68: #{positional_encoding_forward.1} parent=61 // pred_check_branch
          %228 = sbr.rel (%p226) target = $region70
        $region69: #{positional_encoding_forward.1} parent=61 // pred_region
          %s229 = smul.u32 2, %s18
          %s230 = smul.addr %s229, 2
          %s231 = sadd.s32 %s17, %s230
          %s232 = smul.addr %s231, 8
          %s233 = scalar_lea.vmem %s2, %s232
          // Predicated region
          $region71: #{positional_encoding_forward.1} parent=69 // pred_check
            _
          $region72: #{positional_encoding_forward.1} parent=69 // pred_check_branch
            %235 = sbr.rel (0) target = $region74
          $region73: #{positional_encoding_forward.1} parent=69 // pred_region
            // Predicated region
            $region75: #{positional_encoding_forward.1} parent=73 // pred_check
              _
            $region76: #{positional_encoding_forward.1} parent=73 // pred_check_branch
              %237 = sbr.rel (0) target = $region78
            $region77: #{positional_encoding_forward.1} parent=73 // pred_region
              // Predicated region
              $region90: #{positional_encoding_forward.1} parent=77 // pred_check
                _
              $region91: #{positional_encoding_forward.1} parent=77 // pred_check_branch
                %255 = sbr.rel (0) target = $region93
              $region92: #{positional_encoding_forward.1} parent=77 // pred_region
                loop: start=0, step=1, limit=1
                $region94: #{positional_encoding_forward.1} parent=92 // loop_pre_header
                  _
                $region95: #{positional_encoding_forward.1} parent=92 // loop_header
                  %s257 = sphi 0, %s261
                  %p258 = scmp.ge.s32.totalorder %s257, 1
                  %s262 = sphi %s225, %s225
                  %s263 = sphi %s233, %s233
                $region96: #{positional_encoding_forward.1} parent=92 // loop_header_branch
                  %260 = sbr.rel (%p258) target = $region100
                $region97: #{positional_encoding_forward.1} parent=92 // loop_body
                  %v264 = vld [vmem:[%s262] sm:$0xff]
                  %265 = vst [vmem:[%s263] sm:$0xff] %v264
                  %v266 = vld [vmem:[%s262 + $0x8] sm:$0xff]
                  %267 = vst [vmem:[%s263 + $0x10] sm:$0xff] %v266
                $region98: #{positional_encoding_forward.1} parent=92 // loop_footer
                  %s261 = sadd.s32 1, %s257
                $region99: #{positional_encoding_forward.1} parent=92 // loop_footer_branch
                  %256 = sbr.rel target = $region95
                $region100: #{positional_encoding_forward.1} parent=92 // loop_exit
                  _
              $region93: #{positional_encoding_forward.1} parent=77 // pred_fallthru
                _
              // Predicated region
              $region101: #{positional_encoding_forward.1} parent=77 // pred_check
                _
              $region102: #{positional_encoding_forward.1} parent=77 // pred_check_branch
                %269 = sbr.rel target = $region104
              $region103: #{positional_encoding_forward.1} parent=77 // pred_region
                _
              $region104: #{positional_encoding_forward.1} parent=77 // pred_fallthru
                _
            $region78: #{positional_encoding_forward.1} parent=73 // pred_fallthru
              _
            // Predicated region
            $region79: #{positional_encoding_forward.1} parent=73 // pred_check
              _
            $region80: #{positional_encoding_forward.1} parent=73 // pred_check_branch
              %239 = sbr.rel target = $region82
            $region81: #{positional_encoding_forward.1} parent=73 // pred_region
              %s241 = ssub.s32 256, 1
              loop: start=0, step=1, limit=1
              $region83: #{positional_encoding_forward.1} parent=81 // loop_pre_header
                _
              $region84: #{positional_encoding_forward.1} parent=81 // loop_header
                %s243 = sphi 0, %s247
                %p244 = scmp.ge.s32.totalorder %s243, 1
                %s248 = sphi %s225, %s225
                %s249 = sphi %s233, %s233
              $region85: #{positional_encoding_forward.1} parent=81 // loop_header_branch
                %246 = sbr.rel (%p244) target = $region89
              $region86: #{positional_encoding_forward.1} parent=81 // loop_body
                %v250 = vld [vmem:[%s248] sm:%s241]
                %251 = vst [vmem:[%s249] sm:%s241] %v250
                %v252 = vld [vmem:[%s248 + $0x8] sm:%s241]
                %253 = vst [vmem:[%s249 + $0x10] sm:%s241] %v252
              $region87: #{positional_encoding_forward.1} parent=81 // loop_footer
                %s247 = sadd.s32 1, %s243
              $region88: #{positional_encoding_forward.1} parent=81 // loop_footer_branch
                %242 = sbr.rel target = $region84
              $region89: #{positional_encoding_forward.1} parent=81 // loop_exit
                _
            $region82: #{positional_encoding_forward.1} parent=73 // pred_fallthru
              _
          $region74: #{positional_encoding_forward.1} parent=69 // pred_fallthru
            _
          %270 = vnop
        $region70: #{positional_encoding_forward.1} parent=61 // pred_fallthru
          _
      $region62: #{positional_encoding_forward.1} parent=5 // pred_fallthru
        _
      %p271 = scmp.le.s32.totalorder 2, %s8
      // Predicated region
      $region105: #{positional_encoding_forward.1} parent=5 // pred_check
        %p272 = pneg %p271
      $region106: #{positional_encoding_forward.1} parent=5 // pred_check_branch
        %274 = sbr.rel (%p272) target = $region108
      $region107: #{positional_encoding_forward.1} parent=5 // pred_region
        %s275 = ssub.s32 %s8, 2
        // Predicated region
        $region109: #{positional_encoding_forward.1} parent=107 // pred_check
          %p276 = pneg %p105
        $region110: #{positional_encoding_forward.1} parent=107 // pred_check_branch
          %278 = sbr.rel (%p276) target = $region112
        $region111: #{positional_encoding_forward.1} parent=107 // pred_region
          %s279 = sand.u32 %s90, 1
          %s280 = sand.u32 %s90, 1
          %s281 = smul.addr %s280, 16
          %s282 = scalar_lea.vmem [#allocation3], %s281
        $region112: #{positional_encoding_forward.1} parent=107 // pred_fallthru
          _
      $region108: #{positional_encoding_forward.1} parent=5 // pred_fallthru
        _
    $region6: #{positional_encoding_forward.1} parent=1 // loop_footer
      %s12 = sadd.s32 1, %s8
    $region7: #{positional_encoding_forward.1} parent=1 // loop_footer_branch
      %7 = sbr.rel target = $region3
    $region8: #{positional_encoding_forward.1} parent=1 // loop_exit
      _

</llo_original>
